<compile_context>
chip_gen: v7x
topology: tpu7x:2x2x1
jax: 0.10.0
libtpu: 0.0.40
codegen_flags: <defaults>
</compile_context>

<pallas_src>
import jax
import jax.numpy as jnp
from jax import lax
from jax.experimental import pallas as pl
from jax.experimental.pallas import tpu as pltpu


def rnn_tagger_kernel(idx_ref, table_ref, wih_ref, whh_ref, b_ref, wfc_ref,
                      bfc_ref, out_ref, hs_ref):
    """Fused embedding gather + tanh RNN recurrence + FC, batch-major."""
    B, T, H = hs_ref.shape
    BT, O = out_ref.shape
    V, _E = table_ref.shape

    # --- 1) Embedding gather as a one-hot matmul (MXU).
    #        idx_ref is (B*T, 1) int32, flattened row-major so row r = b*T + t.
    onehot = (idx_ref[...] ==
              lax.broadcasted_iota(jnp.int32, (BT, V), 1)).astype(jnp.float32)
    emb = jnp.dot(onehot, table_ref[...],
                  preferred_element_type=jnp.float32)            # (B*T, E)

    # --- 2) Hoisted input projection for ALL timesteps; combined bias added once.
    xp = (jnp.dot(emb, wih_ref[...], preferred_element_type=jnp.float32)
          + b_ref[...]).reshape(B, T, H)                         # (B, T, H)

    # --- 3) Serial recurrence: h_t = tanh(xp_t + h_{t-1} @ W_hh).
    #        h stays register-resident; per-step critical path = one matmul + tanh.
    #        T is small & static -> fully unrolled (LLO scheduler sees every step).
    #        (For long sequences use lax.fori_loop(..., unroll=k) to bound code size.)
    whh = whh_ref[...]
    h = jnp.zeros((B, H), jnp.float32)
    for t in range(T):
        h = jnp.tanh(xp[:, t, :]
                     + jnp.dot(h, whh, preferred_element_type=jnp.float32))
        hs_ref[:, t, :] = h      # side store (off the serial chain) for the batched FC

    # --- 4) Hoisted FC: single (B*T, H) x (H, O) matmul + one dense 2-D output store.
    out = (jnp.dot(hs_ref[...].reshape(BT, H), wfc_ref[...],
                   preferred_element_type=jnp.float32) + bfc_ref[...])
    out_ref[...] = out.astype(out_ref.dtype)


def rnn_tagger_forward(text, params):
    """text: (B, T) int32 token ids.  Returns (B, T, O) f32, batch_first like PyTorch."""
    B, T = text.shape
    table = params["embedding"].astype(jnp.float32)              # (V, E)
    w_ih = params["w_ih"]                                        # (E, H) == weight_ih_l0.T
    w_hh = params["w_hh"]                                        # (H, H) == weight_hh_l0.T
    b = params["b_ih"] + params["b_hh"]                          # (1, H) combined bias
    w_fc = params["w_fc"]                                        # (H, O) == fc.weight.T
    b_fc = params["b_fc"]                                        # (1, O)
    V, E = table.shape
    H = w_hh.shape[0]
    O = w_fc.shape[1]
    BT = B * T

    # Only wrapper-side glue: metadata-only reshape of the tiny int32 id tensor so the
    # in-kernel one-hot gather needs no lane->sublane relayout.
    idx = text.reshape(BT, 1).astype(jnp.int32)

    flops = int(2 * BT * (V * E + E * H + H * H + H * O))
    transcendentals = int(BT * H)
    bytes_accessed = int(4 * (BT + V * E + E * H + H * H + H + H * O + O + BT * O))

    out2d = pl.pallas_call(
        rnn_tagger_kernel,
        out_shape=jax.ShapeDtypeStruct((BT, O), jnp.float32),
        grid=(1,),
        in_specs=[
            pl.BlockSpec((BT, 1), lambda i: (0, 0)),      # token ids
            pl.BlockSpec((V, E), lambda i: (0, 0)),       # embedding table
            pl.BlockSpec((E, H), lambda i: (0, 0)),       # W_ih
            pl.BlockSpec((H, H), lambda i: (0, 0)),       # W_hh
            pl.BlockSpec((1, H), lambda i: (0, 0)),       # b_ih + b_hh
            pl.BlockSpec((H, O), lambda i: (0, 0)),       # W_fc
            pl.BlockSpec((1, O), lambda i: (0, 0)),       # b_fc
        ],
        out_specs=pl.BlockSpec((BT, O), lambda i: (0, 0)),
        scratch_shapes=[pltpu.VMEM((B, T, H), jnp.float32)],
        compiler_params=pltpu.CompilerParams(
            dimension_semantics=("arbitrary",)),
        cost_estimate=pl.CostEstimate(flops=flops,
                                      transcendentals=transcendentals,
                                      bytes_accessed=bytes_accessed),
    )(idx, table, w_ih, w_hh, b, w_fc, b_fc)
    # TODO(synk): for long sequences / big batch (esp. v7x's 64 MiB VMEM) tile T across a
    # grid axis, carry h in a VMEM scratch gated with pl.when(pl.program_id(0) == 0), and
    # set vmem_limit_bytes; unnecessary at these shapes.
    return out2d.reshape(B, T, O)   # metadata-only: row r of out2d is (b*T + t)


def rnn_tagger_reference(text, params):
    """Pure-JAX reference mirroring the PyTorch forward."""
    emb = jnp.take(params["embedding"], text, axis=0).astype(jnp.float32)
    b = params["b_ih"] + params["b_hh"]
    B, T, _ = emb.shape
    H = params["w_hh"].shape[0]
    h = jnp.zeros((B, H), jnp.float32)
    outs = []
    for t in range(T):
        h = jnp.tanh(emb[:, t, :] @ params["w_ih"] + h @ params["w_hh"] + b)
        outs.append(h @ params["w_fc"] + params["b_fc"])
    return jnp.stack(outs, axis=1)


def init_params(key, input_dim, embedding_dim, hidden_dim, output_dim):
    ks = jax.random.split(key, 7)
    k_rnn = 1.0 / jnp.sqrt(hidden_dim)
    k_fc = 1.0 / jnp.sqrt(hidden_dim)
    u = lambda k, shape, bound: jax.random.uniform(
        k, shape, jnp.float32, minval=-bound, maxval=bound)
    return {
        "embedding": jax.random.normal(ks[0], (input_dim, embedding_dim),
                                       jnp.float32),
        # stored pre-transposed relative to PyTorch (x @ W instead of x @ W.T)
        "w_ih": u(ks[1], (embedding_dim, hidden_dim), k_rnn),
        "w_hh": u(ks[2], (hidden_dim, hidden_dim), k_rnn),
        "b_ih": u(ks[3], (1, hidden_dim), k_rnn),
        "b_hh": u(ks[4], (1, hidden_dim), k_rnn),
        "w_fc": u(ks[5], (hidden_dim, output_dim), k_fc),
        "b_fc": u(ks[6], (1, output_dim), k_fc),
    }


if __name__ == "__main__":
    # Module hyper-params (n_layers / bidirectional / dropout are unused by the PyTorch
    # forward as written: nn.RNN is constructed single-layer, unidirectional).
    input_dim = 20       # vocab size
    embedding_dim = 16
    hidden_dim = 32
    output_dim = 8
    batch, seq = 2, 8

    key = jax.random.PRNGKey(0)
    k_params, k_text = jax.random.split(key)
    params = init_params(k_params, input_dim, embedding_dim, hidden_dim, output_dim)
    text = jax.random.randint(k_text, (batch, seq), 0, input_dim, dtype=jnp.int32)

    preds = jax.block_until_ready(rnn_tagger_forward(text, params))
    ref = jax.block_until_ready(rnn_tagger_reference(text, params))

    assert preds.shape == (batch, seq, output_dim), preds.shape
    assert jnp.allclose(preds, ref, rtol=1e-3, atol=1e-3), "mismatch vs reference"
    print("KERNEL_OK")
</pallas_src>

<mosaic_0001>
module attributes {stable_mosaic.version = 11 : i64} {
  func.func @rnn_tagger_kernel(%arg0: i32, %arg1: memref<16x1xi32, #tpu.memory_space<vmem>>, %arg2: memref<20x16xf32, #tpu.memory_space<vmem>>, %arg3: memref<16x32xf32, #tpu.memory_space<vmem>>, %arg4: memref<32x32xf32, #tpu.memory_space<vmem>>, %arg5: memref<1x32xf32, #tpu.memory_space<vmem>>, %arg6: memref<32x8xf32, #tpu.memory_space<vmem>>, %arg7: memref<1x8xf32, #tpu.memory_space<vmem>>, %arg8: memref<16x8xf32, #tpu.memory_space<vmem>>, %arg9: memref<2x8x32xf32, #tpu.memory_space<vmem>>) attributes {dimension_semantics = [#tpu.dimension_semantics<arbitrary>], iteration_bounds = array<i64: 1>, scalar_prefetch = 0 : i64, scratch_operands = 1 : i64, tpu.core_type = #tpu.core_type<tc>, window_params = [{pipeline_mode = #tpu.pipeline_mode<synchronous>, transform_indices = @transform_0, window_bounds = array<i64: 16, 1>}, {pipeline_mode = #tpu.pipeline_mode<synchronous>, transform_indices = @transform_1, window_bounds = array<i64: 20, 16>}, {pipeline_mode = #tpu.pipeline_mode<synchronous>, transform_indices = @transform_2, window_bounds = array<i64: 16, 32>}, {pipeline_mode = #tpu.pipeline_mode<synchronous>, transform_indices = @transform_3, window_bounds = array<i64: 32, 32>}, {pipeline_mode = #tpu.pipeline_mode<synchronous>, transform_indices = @transform_4, window_bounds = array<i64: 1, 32>}, {pipeline_mode = #tpu.pipeline_mode<synchronous>, transform_indices = @transform_5, window_bounds = array<i64: 32, 8>}, {pipeline_mode = #tpu.pipeline_mode<synchronous>, transform_indices = @transform_6, window_bounds = array<i64: 1, 8>}, {pipeline_mode = #tpu.pipeline_mode<synchronous>, transform_indices = @transform_7, window_bounds = array<i64: 16, 8>}]} {
    %c0 = arith.constant 0 : index
    %c0_0 = arith.constant 0 : index
    %0 = vector.load %arg1[%c0, %c0_0] : memref<16x1xi32, #tpu.memory_space<vmem>>, vector<16x1xi32>
    %1 = tpu.iota {dimensions = array<i32: 1>} : vector<16x20xi32>
    %2 = vector.broadcast %0 : vector<16x1xi32> to vector<16x20xi32>
    %3 = arith.cmpi eq, %2, %1 : vector<16x20xi32>
    %4 = arith.extui %3 : vector<16x20xi1> to vector<16x20xi32>
    %5 = arith.sitofp %4 : vector<16x20xi32> to vector<16x20xf32>
    %c0_1 = arith.constant 0 : index
    %c0_2 = arith.constant 0 : index
    %6 = vector.load %arg2[%c0_1, %c0_2] : memref<20x16xf32, #tpu.memory_space<vmem>>, vector<20x16xf32>
    %cst = arith.constant dense<0.000000e+00> : vector<16x16xf32>
    %7 = tpu.matmul %5, %6, %cst {dimension_numbers = #tpu.dot_dimension_numbers<[1], [0], [0], [1], [0, 0, 1, 1], [], []>} : vector<16x20xf32>, vector<20x16xf32>, vector<16x16xf32> -> vector<16x16xf32>
    %c0_3 = arith.constant 0 : index
    %c0_4 = arith.constant 0 : index
    %8 = vector.load %arg3[%c0_3, %c0_4] : memref<16x32xf32, #tpu.memory_space<vmem>>, vector<16x32xf32>
    %cst_5 = arith.constant dense<0.000000e+00> : vector<16x32xf32>
    %9 = tpu.matmul %7, %8, %cst_5 {dimension_numbers = #tpu.dot_dimension_numbers<[1], [0], [0], [1], [0, 0, 1, 1], [], []>} : vector<16x16xf32>, vector<16x32xf32>, vector<16x32xf32> -> vector<16x32xf32>
    %c0_6 = arith.constant 0 : index
    %c0_7 = arith.constant 0 : index
    %10 = vector.load %arg5[%c0_6, %c0_7] : memref<1x32xf32, #tpu.memory_space<vmem>>, vector<1x32xf32>
    %11 = vector.broadcast %10 : vector<1x32xf32> to vector<16x32xf32>
    %12 = arith.addf %9, %11 : vector<16x32xf32>
    %13 = vector.shape_cast %12 : vector<16x32xf32> to vector<2x8x32xf32>
    %c0_8 = arith.constant 0 : index
    %c0_9 = arith.constant 0 : index
    %14 = vector.load %arg4[%c0_8, %c0_9] : memref<32x32xf32, #tpu.memory_space<vmem>>, vector<32x32xf32>
    %cst_10 = arith.constant 0.000000e+00 : f32
    %15 = vector.broadcast %cst_10 : f32 to vector<2x32xf32>
    %16 = vector.extract_strided_slice %13 {offsets = [0, 0, 0], sizes = [2, 1, 32], strides = [1, 1, 1]} : vector<2x8x32xf32> to vector<2x1x32xf32>
    %17 = vector.shape_cast %16 : vector<2x1x32xf32> to vector<2x32xf32>
    %cst_11 = arith.constant dense<0.000000e+00> : vector<2x32xf32>
    %18 = tpu.matmul %15, %14, %cst_11 {dimension_numbers = #tpu.dot_dimension_numbers<[1], [0], [0], [1], [0, 0, 1, 1], [], []>} : vector<2x32xf32>, vector<32x32xf32>, vector<2x32xf32> -> vector<2x32xf32>
    %19 = arith.addf %17, %18 : vector<2x32xf32>
    %20 = math.tanh %19 : vector<2x32xf32>
    %c0_12 = arith.constant 0 : index
    %c0_13 = arith.constant 0 : index
    %c0_14 = arith.constant 0 : index
    %21 = vector.load %arg9[%c0_12, %c0_13, %c0_14] : memref<2x8x32xf32, #tpu.memory_space<vmem>>, vector<2x1x32xf32>
    %22 = vector.shape_cast %21 : vector<2x1x32xf32> to vector<2x32xf32>
    %23 = vector.shape_cast %20 : vector<2x32xf32> to vector<2x1x32xf32>
    tpu.vector_store %arg9[%c0_12, %c0_13, %c0_14], %23 {strides = array<i32>} : memref<2x8x32xf32, #tpu.memory_space<vmem>>, vector<2x1x32xf32>,
    %24 = vector.extract_strided_slice %13 {offsets = [0, 1, 0], sizes = [2, 1, 32], strides = [1, 1, 1]} : vector<2x8x32xf32> to vector<2x1x32xf32>
    %25 = vector.shape_cast %24 : vector<2x1x32xf32> to vector<2x32xf32>
    %cst_15 = arith.constant dense<0.000000e+00> : vector<2x32xf32>
    %26 = tpu.matmul %20, %14, %cst_15 {dimension_numbers = #tpu.dot_dimension_numbers<[1], [0], [0], [1], [0, 0, 1, 1], [], []>} : vector<2x32xf32>, vector<32x32xf32>, vector<2x32xf32> -> vector<2x32xf32>
    %27 = arith.addf %25, %26 : vector<2x32xf32>
    %28 = math.tanh %27 : vector<2x32xf32>
    %c0_16 = arith.constant 0 : index
    %c1 = arith.constant 1 : index
    %c0_17 = arith.constant 0 : index
    %29 = vector.load %arg9[%c0_16, %c1, %c0_17] : memref<2x8x32xf32, #tpu.memory_space<vmem>>, vector<2x1x32xf32>
    %30 = vector.shape_cast %29 : vector<2x1x32xf32> to vector<2x32xf32>
    %31 = vector.shape_cast %28 : vector<2x32xf32> to vector<2x1x32xf32>
    tpu.vector_store %arg9[%c0_16, %c1, %c0_17], %31 {strides = array<i32>} : memref<2x8x32xf32, #tpu.memory_space<vmem>>, vector<2x1x32xf32>,
    %32 = vector.extract_strided_slice %13 {offsets = [0, 2, 0], sizes = [2, 1, 32], strides = [1, 1, 1]} : vector<2x8x32xf32> to vector<2x1x32xf32>
    %33 = vector.shape_cast %32 : vector<2x1x32xf32> to vector<2x32xf32>
    %cst_18 = arith.constant dense<0.000000e+00> : vector<2x32xf32>
    %34 = tpu.matmul %28, %14, %cst_18 {dimension_numbers = #tpu.dot_dimension_numbers<[1], [0], [0], [1], [0, 0, 1, 1], [], []>} : vector<2x32xf32>, vector<32x32xf32>, vector<2x32xf32> -> vector<2x32xf32>
    %35 = arith.addf %33, %34 : vector<2x32xf32>
    %36 = math.tanh %35 : vector<2x32xf32>
    %c0_19 = arith.constant 0 : index
    %c2 = arith.constant 2 : index
    %c0_20 = arith.constant 0 : index
    %37 = vector.load %arg9[%c0_19, %c2, %c0_20] : memref<2x8x32xf32, #tpu.memory_space<vmem>>, vector<2x1x32xf32>
    %38 = vector.shape_cast %37 : vector<2x1x32xf32> to vector<2x32xf32>
    %39 = vector.shape_cast %36 : vector<2x32xf32> to vector<2x1x32xf32>
    tpu.vector_store %arg9[%c0_19, %c2, %c0_20], %39 {strides = array<i32>} : memref<2x8x32xf32, #tpu.memory_space<vmem>>, vector<2x1x32xf32>,
    %40 = vector.extract_strided_slice %13 {offsets = [0, 3, 0], sizes = [2, 1, 32], strides = [1, 1, 1]} : vector<2x8x32xf32> to vector<2x1x32xf32>
    %41 = vector.shape_cast %40 : vector<2x1x32xf32> to vector<2x32xf32>
    %cst_21 = arith.constant dense<0.000000e+00> : vector<2x32xf32>
    %42 = tpu.matmul %36, %14, %cst_21 {dimension_numbers = #tpu.dot_dimension_numbers<[1], [0], [0], [1], [0, 0, 1, 1], [], []>} : vector<2x32xf32>, vector<32x32xf32>, vector<2x32xf32> -> vector<2x32xf32>
    %43 = arith.addf %41, %42 : vector<2x32xf32>
    %44 = math.tanh %43 : vector<2x32xf32>
    %c0_22 = arith.constant 0 : index
    %c3 = arith.constant 3 : index
    %c0_23 = arith.constant 0 : index
    %45 = vector.load %arg9[%c0_22, %c3, %c0_23] : memref<2x8x32xf32, #tpu.memory_space<vmem>>, vector<2x1x32xf32>
    %46 = vector.shape_cast %45 : vector<2x1x32xf32> to vector<2x32xf32>
    %47 = vector.shape_cast %44 : vector<2x32xf32> to vector<2x1x32xf32>
    tpu.vector_store %arg9[%c0_22, %c3, %c0_23], %47 {strides = array<i32>} : memref<2x8x32xf32, #tpu.memory_space<vmem>>, vector<2x1x32xf32>,
    %48 = vector.extract_strided_slice %13 {offsets = [0, 4, 0], sizes = [2, 1, 32], strides = [1, 1, 1]} : vector<2x8x32xf32> to vector<2x1x32xf32>
    %49 = vector.shape_cast %48 : vector<2x1x32xf32> to vector<2x32xf32>
    %cst_24 = arith.constant dense<0.000000e+00> : vector<2x32xf32>
    %50 = tpu.matmul %44, %14, %cst_24 {dimension_numbers = #tpu.dot_dimension_numbers<[1], [0], [0], [1], [0, 0, 1, 1], [], []>} : vector<2x32xf32>, vector<32x32xf32>, vector<2x32xf32> -> vector<2x32xf32>
    %51 = arith.addf %49, %50 : vector<2x32xf32>
    %52 = math.tanh %51 : vector<2x32xf32>
    %c0_25 = arith.constant 0 : index
    %c4 = arith.constant 4 : index
    %c0_26 = arith.constant 0 : index
    %53 = vector.load %arg9[%c0_25, %c4, %c0_26] : memref<2x8x32xf32, #tpu.memory_space<vmem>>, vector<2x1x32xf32>
    %54 = vector.shape_cast %53 : vector<2x1x32xf32> to vector<2x32xf32>
    %55 = vector.shape_cast %52 : vector<2x32xf32> to vector<2x1x32xf32>
    tpu.vector_store %arg9[%c0_25, %c4, %c0_26], %55 {strides = array<i32>} : memref<2x8x32xf32, #tpu.memory_space<vmem>>, vector<2x1x32xf32>,
    %56 = vector.extract_strided_slice %13 {offsets = [0, 5, 0], sizes = [2, 1, 32], strides = [1, 1, 1]} : vector<2x8x32xf32> to vector<2x1x32xf32>
    %57 = vector.shape_cast %56 : vector<2x1x32xf32> to vector<2x32xf32>
    %cst_27 = arith.constant dense<0.000000e+00> : vector<2x32xf32>
    %58 = tpu.matmul %52, %14, %cst_27 {dimension_numbers = #tpu.dot_dimension_numbers<[1], [0], [0], [1], [0, 0, 1, 1], [], []>} : vector<2x32xf32>, vector<32x32xf32>, vector<2x32xf32> -> vector<2x32xf32>
    %59 = arith.addf %57, %58 : vector<2x32xf32>
    %60 = math.tanh %59 : vector<2x32xf32>
    %c0_28 = arith.constant 0 : index
    %c5 = arith.constant 5 : index
    %c0_29 = arith.constant 0 : index
    %61 = vector.load %arg9[%c0_28, %c5, %c0_29] : memref<2x8x32xf32, #tpu.memory_space<vmem>>, vector<2x1x32xf32>
    %62 = vector.shape_cast %61 : vector<2x1x32xf32> to vector<2x32xf32>
    %63 = vector.shape_cast %60 : vector<2x32xf32> to vector<2x1x32xf32>
    tpu.vector_store %arg9[%c0_28, %c5, %c0_29], %63 {strides = array<i32>} : memref<2x8x32xf32, #tpu.memory_space<vmem>>, vector<2x1x32xf32>,
    %64 = vector.extract_strided_slice %13 {offsets = [0, 6, 0], sizes = [2, 1, 32], strides = [1, 1, 1]} : vector<2x8x32xf32> to vector<2x1x32xf32>
    %65 = vector.shape_cast %64 : vector<2x1x32xf32> to vector<2x32xf32>
    %cst_30 = arith.constant dense<0.000000e+00> : vector<2x32xf32>
    %66 = tpu.matmul %60, %14, %cst_30 {dimension_numbers = #tpu.dot_dimension_numbers<[1], [0], [0], [1], [0, 0, 1, 1], [], []>} : vector<2x32xf32>, vector<32x32xf32>, vector<2x32xf32> -> vector<2x32xf32>
    %67 = arith.addf %65, %66 : vector<2x32xf32>
    %68 = math.tanh %67 : vector<2x32xf32>
    %c0_31 = arith.constant 0 : index
    %c6 = arith.constant 6 : index
    %c0_32 = arith.constant 0 : index
    %69 = vector.load %arg9[%c0_31, %c6, %c0_32] : memref<2x8x32xf32, #tpu.memory_space<vmem>>, vector<2x1x32xf32>
    %70 = vector.shape_cast %69 : vector<2x1x32xf32> to vector<2x32xf32>
    %71 = vector.shape_cast %68 : vector<2x32xf32> to vector<2x1x32xf32>
    tpu.vector_store %arg9[%c0_31, %c6, %c0_32], %71 {strides = array<i32>} : memref<2x8x32xf32, #tpu.memory_space<vmem>>, vector<2x1x32xf32>,
    %72 = vector.extract_strided_slice %13 {offsets = [0, 7, 0], sizes = [2, 1, 32], strides = [1, 1, 1]} : vector<2x8x32xf32> to vector<2x1x32xf32>
    %73 = vector.shape_cast %72 : vector<2x1x32xf32> to vector<2x32xf32>
    %cst_33 = arith.constant dense<0.000000e+00> : vector<2x32xf32>
    %74 = tpu.matmul %68, %14, %cst_33 {dimension_numbers = #tpu.dot_dimension_numbers<[1], [0], [0], [1], [0, 0, 1, 1], [], []>} : vector<2x32xf32>, vector<32x32xf32>, vector<2x32xf32> -> vector<2x32xf32>
    %75 = arith.addf %73, %74 : vector<2x32xf32>
    %76 = math.tanh %75 : vector<2x32xf32>
    %c0_34 = arith.constant 0 : index
    %c7 = arith.constant 7 : index
    %c0_35 = arith.constant 0 : index
    %77 = vector.load %arg9[%c0_34, %c7, %c0_35] : memref<2x8x32xf32, #tpu.memory_space<vmem>>, vector<2x1x32xf32>
    %78 = vector.shape_cast %77 : vector<2x1x32xf32> to vector<2x32xf32>
    %79 = vector.shape_cast %76 : vector<2x32xf32> to vector<2x1x32xf32>
    tpu.vector_store %arg9[%c0_34, %c7, %c0_35], %79 {strides = array<i32>} : memref<2x8x32xf32, #tpu.memory_space<vmem>>, vector<2x1x32xf32>,
    %c0_36 = arith.constant 0 : index
    %c0_37 = arith.constant 0 : index
    %c0_38 = arith.constant 0 : index
    %80 = vector.load %arg9[%c0_36, %c0_37, %c0_38] : memref<2x8x32xf32, #tpu.memory_space<vmem>>, vector<2x8x32xf32>
    %81 = vector.shape_cast %80 : vector<2x8x32xf32> to vector<16x32xf32>
    %c0_39 = arith.constant 0 : index
    %c0_40 = arith.constant 0 : index
    %82 = vector.load %arg6[%c0_39, %c0_40] : memref<32x8xf32, #tpu.memory_space<vmem>>, vector<32x8xf32>
    %cst_41 = arith.constant dense<0.000000e+00> : vector<16x8xf32>
    %83 = tpu.matmul %81, %82, %cst_41 {dimension_numbers = #tpu.dot_dimension_numbers<[1], [0], [0], [1], [0, 0, 1, 1], [], []>} : vector<16x32xf32>, vector<32x8xf32>, vector<16x8xf32> -> vector<16x8xf32>
    %c0_42 = arith.constant 0 : index
    %c0_43 = arith.constant 0 : index
    %84 = vector.load %arg7[%c0_42, %c0_43] : memref<1x8xf32, #tpu.memory_space<vmem>>, vector<1x8xf32>
    %85 = vector.broadcast %84 : vector<1x8xf32> to vector<16x8xf32>
    %86 = arith.addf %83, %85 : vector<16x8xf32>
    %c0_44 = arith.constant 0 : index
    %c0_45 = arith.constant 0 : index
    %87 = vector.load %arg8[%c0_44, %c0_45] : memref<16x8xf32, #tpu.memory_space<vmem>>, vector<16x8xf32>
    tpu.vector_store %arg8[%c0_44, %c0_45], %86 {strides = array<i32>} : memref<16x8xf32, #tpu.memory_space<vmem>>, vector<16x8xf32>,
    return
  }
  func.func @transform_0(%arg0: i32) -> (i32, i32) {
    %c0_i32 = arith.constant 0 : i32
    %c0_i32_0 = arith.constant 0 : i32
    %c0_i32_1 = arith.constant 0 : i32
    return %c0_i32, %c0_i32_0 : i32, i32
  }
  func.func @transform_1(%arg0: i32) -> (i32, i32) {
    %c0_i32 = arith.constant 0 : i32
    %c0_i32_0 = arith.constant 0 : i32
    %c0_i32_1 = arith.constant 0 : i32
    return %c0_i32, %c0_i32_0 : i32, i32
  }
  func.func @transform_2(%arg0: i32) -> (i32, i32) {
    %c0_i32 = arith.constant 0 : i32
    %c0_i32_0 = arith.constant 0 : i32
    %c0_i32_1 = arith.constant 0 : i32
    return %c0_i32, %c0_i32_0 : i32, i32
  }
  func.func @transform_3(%arg0: i32) -> (i32, i32) {
    %c0_i32 = arith.constant 0 : i32
    %c0_i32_0 = arith.constant 0 : i32
    %c0_i32_1 = arith.constant 0 : i32
    return %c0_i32, %c0_i32_0 : i32, i32
  }
  func.func @transform_4(%arg0: i32) -> (i32, i32) {
    %c0_i32 = arith.constant 0 : i32
    %c0_i32_0 = arith.constant 0 : i32
    %c0_i32_1 = arith.constant 0 : i32
    return %c0_i32, %c0_i32_0 : i32, i32
  }
  func.func @transform_5(%arg0: i32) -> (i32, i32) {
    %c0_i32 = arith.constant 0 : i32
    %c0_i32_0 = arith.constant 0 : i32
    %c0_i32_1 = arith.constant 0 : i32
    return %c0_i32, %c0_i32_0 : i32, i32
  }
  func.func @transform_6(%arg0: i32) -> (i32, i32) {
    %c0_i32 = arith.constant 0 : i32
    %c0_i32_0 = arith.constant 0 : i32
    %c0_i32_1 = arith.constant 0 : i32
    return %c0_i32, %c0_i32_0 : i32, i32
  }
  func.func @transform_7(%arg0: i32) -> (i32, i32) {
    %c0_i32 = arith.constant 0 : i32
    %c0_i32_0 = arith.constant 0 : i32
    %c0_i32_1 = arith.constant 0 : i32
    return %c0_i32, %c0_i32_0 : i32, i32
  }
}

</mosaic_0001>

<llo_original>
// kernel: tpu_custom_call.1
$region0: #{tpu_custom_call.1}
  #allocation0 [shape = 'u32[]', space=smem, size = 0x4, offset = 0x4, fixed_abs, tag = 'smem constant byte address 0x4 - core index']
  #allocation1 [shape = 'u32[144,128]{1,0:T(1,128)}', space=vmem, size = 0x12000, scoped, tag = 'internal scratch']
  #allocation2 [shape = 'f32[2,8,32]{2,1,0:T(8,128)}', space=vmem, size = 0x2000, scoped, tag = 'scratch operand']
  %s0 = inlined_call_operand.vmem [shape: s32[16,1], index: 0, kind: input, shape index: {}]
  %s1 = inlined_call_operand.vmem [shape: f32[20,16], index: 1, kind: input, shape index: {}]
  %s2 = inlined_call_operand.vmem [shape: f32[16,32], index: 2, kind: input, shape index: {}]
  %s3 = inlined_call_operand.vmem [shape: f32[32,32], index: 3, kind: input, shape index: {}]
  %s4 = inlined_call_operand.vmem [shape: f32[1,32], index: 4, kind: input, shape index: {}]
  %s5 = inlined_call_operand.vmem [shape: f32[32,8], index: 5, kind: input, shape index: {}]
  %s6 = inlined_call_operand.vmem [shape: f32[1,8], index: 6, kind: input, shape index: {}]
  %s7 = inlined_call_operand.vmem [shape: f32[16,8], index: 7, kind: output, shape index: {}]
  %s8 = sld [smem:[#allocation0]]
  $region38: #{tpu_custom_call.1} parent=0
    _
  %s10 = ssub.s32 1, %s8
  %s11 = scalar_select 0, %s10, %s8
  // Predicated region
  $region2: #{tpu_custom_call.1} parent=0 // pred_check
    _
  $region3: #{tpu_custom_call.1} parent=0 // pred_check_branch
    %13 = sbr.rel (0) target = $region5
  $region4: #{tpu_custom_call.1} parent=0 // pred_region
    _
  $region5: #{tpu_custom_call.1} parent=0 // pred_fallthru
    _
  // Predicated region
  $region6: #{tpu_custom_call.1} parent=0 // pred_check
    _
  $region7: #{tpu_custom_call.1} parent=0 // pred_check_branch
    %15 = sbr.rel (0) target = $region9
  $region8: #{tpu_custom_call.1} parent=0 // pred_region
    _
  $region9: #{tpu_custom_call.1} parent=0 // pred_fallthru
    _
  // Predicated region
  $region10: #{tpu_custom_call.1} parent=0 // pred_check
    _
  $region11: #{tpu_custom_call.1} parent=0 // pred_check_branch
    %17 = sbr.rel (0) target = $region13
  $region12: #{tpu_custom_call.1} parent=0 // pred_region
    _
  $region13: #{tpu_custom_call.1} parent=0 // pred_fallthru
    _
  // Predicated region
  $region14: #{tpu_custom_call.1} parent=0 // pred_check
    _
  $region15: #{tpu_custom_call.1} parent=0 // pred_check_branch
    %19 = sbr.rel (0) target = $region17
  $region16: #{tpu_custom_call.1} parent=0 // pred_region
    _
  $region17: #{tpu_custom_call.1} parent=0 // pred_fallthru
    _
  // Predicated region
  $region18: #{tpu_custom_call.1} parent=0 // pred_check
    _
  $region19: #{tpu_custom_call.1} parent=0 // pred_check_branch
    %21 = sbr.rel (0) target = $region21
  $region20: #{tpu_custom_call.1} parent=0 // pred_region
    _
  $region21: #{tpu_custom_call.1} parent=0 // pred_fallthru
    _
  // Predicated region
  $region22: #{tpu_custom_call.1} parent=0 // pred_check
    _
  $region23: #{tpu_custom_call.1} parent=0 // pred_check_branch
    %23 = sbr.rel (0) target = $region25
  $region24: #{tpu_custom_call.1} parent=0 // pred_region
    _
  $region25: #{tpu_custom_call.1} parent=0 // pred_fallthru
    _
  // Predicated region
  $region26: #{tpu_custom_call.1} parent=0 // pred_check
    _
  $region27: #{tpu_custom_call.1} parent=0 // pred_check_branch
    %25 = sbr.rel (0) target = $region29
  $region28: #{tpu_custom_call.1} parent=0 // pred_region
    _
  $region29: #{tpu_custom_call.1} parent=0 // pred_fallthru
    _
  %v26 = vld [vmem:[%s0] sm:$0xff]
  %v27 = vld [vmem:[%s0 + $0x8] sm:$0xff]
  %v28 = vlaneseq
  %v29 = vand.u32 %v28, 127
  %30 = vset.pattern.permute.xlu0 0
  %31 = vperm.xlu0 %30, %v26
  %v32 = vpop.permute.xlu0 %31
  %33 = vset.pattern.permute.xlu0 0
  %34 = vperm.xlu0 %33, %v27
  %v35 = vpop.permute.xlu0 %34
  %vm36 = vcmp.eq.s32.totalorder %v32, %v29
  %vm37 = vcmp.eq.s32.totalorder %v35, %v29
  %v38 = vsel %vm36, 1, 0
  %v39 = vsel %vm37, 1, 0
  %v40 = vcvt.s32.f32 %v38
  %v41 = vcvt.s32.f32 %v39
  %v42 = vld [vmem:[%s1] sm:$0xff]
  %v43 = vld [vmem:[%s1 + $0x8] sm:$0xff]
  %v44 = vld [vmem:[%s1 + $0x10] sm:$0xf]
  %vm45 = vcmask 162816
  %v47 = vsel %vm45, %v40, 0
  %v50 = vsel %vm45, %v41, 0
  %vm52 = vcmask 1043456
  %v54 = vsel %vm52, %v44, 0
  %56 = vmatprep.subr.mxu0 0.0
  %57 = vmatpush1.msra.mxu0 %v42
  %58 = vmatprep.subr.mxu0 0.0
  %59 = vmatpush1.msra.mxu0 %v43
  %60 = vmatprep.subr.mxu0 0.0
  %61 = vmatpush1.msra.mxu0 %v54
  %62 = vmatprep.subr.mxu0 0.0
  %63 = vmatpush1.msra.mxu0 0.0
  %64 = vmatprep.subr.mxu0 0.0
  %65 = vmatpush1.msra.mxu0 0.0
  %66 = vmatprep.subr.mxu0 0.0
  %67 = vmatpush1.msra.mxu0 0.0
  %68 = vmatprep.subr.mxu0 0.0
  %69 = vmatpush1.msra.mxu0 0.0
  %70 = vmatprep.subr.mxu0 0.0
  %71 = vmatpush1.msra.mxu0 0.0
  %72 = vmatprep.subr.mxu0 0.0
  %73 = vmatpush1.msra.mxu0 0.0
  %74 = vmatprep.subr.mxu0 0.0
  %75 = vmatpush1.msra.mxu0 0.0
  %76 = vmatprep.subr.mxu0 0.0
  %77 = vmatpush1.msra.mxu0 0.0
  %78 = vmatprep.subr.mxu0 0.0
  %79 = vmatpush1.msra.mxu0 0.0
  %80 = vmatprep.subr.mxu0 0.0
  %81 = vmatpush1.msra.mxu0 0.0
  %82 = vmatprep.subr.mxu0 0.0
  %83 = vmatpush1.msra.mxu0 0.0
  %84 = vmatprep.subr.mxu0 0.0
  %85 = vmatpush1.msra.mxu0 0.0
  %86 = vmatprep.subr.mxu0 0.0
  %87 = vmatpush1.msra.mxu0 0.0
  %88 = vmatprep.subr.mxu0 0.0
  %89 = vmatpush1.msra.mxu0 0.0
  %90 = vmatprep.subr.mxu0 0.0
  %91 = vmatpush1.msra.mxu0 0.0
  %92 = vmatprep.subr.mxu0 0.0
  %93 = vmatpush1.msra.mxu0 0.0
  %94 = vmatprep.subr.mxu0 0.0
  %95 = vmatpush1.msra.mxu0 0.0
  %96 = vmatprep.subr.mxu0 0.0
  %97 = vmatpush1.msra.mxu0 0.0
  %98 = vmatprep.subr.mxu0 0.0
  %99 = vmatpush1.msra.mxu0 0.0
  %100 = vmatprep.subr.mxu0 0.0
  %101 = vmatpush1.msra.mxu0 0.0
  %102 = vmatprep.subr.mxu0 0.0
  %103 = vmatpush1.msra.mxu0 0.0
  %104 = vmatprep.subr.mxu0 0.0
  %105 = vmatpush1.msra.mxu0 0.0
  %106 = vmatprep.subr.mxu0 0.0
  %107 = vmatpush1.msra.mxu0 0.0
  %108 = vmatprep.subr.mxu0 0.0
  %109 = vmatpush1.msra.mxu0 0.0
  %110 = vmatprep.subr.mxu0 0.0
  %111 = vmatpush1.msra.mxu0 0.0
  %112 = vmatprep.subr.mxu0 0.0
  %113 = vmatpush1.msra.mxu0 0.0
  %114 = vmatprep.subr.mxu0 0.0
  %115 = vmatpush1.msra.mxu0 0.0
  %116 = vmatprep.subr.mxu0 0.0
  %117 = vmatpush1.msra.mxu0 0.0
  %118 = vmatprep.subr.mxu0 0.0
  %119 = vmatpush1.msra.mxu0 0.0
  %120 = vmatprep.mubr.f32.mxu0 0.0
  %121 = vmatmul.mubr.f32.gmra.mrb[0].mxu0 %v47
  %v122 = vpop.f32.mrb[0].mxu0
  %v123 = vadd.f32 0.0, %v122
  %v124 = vpop.f32.mrb[0].mxu0
  %125 = vmatprep.mubr.f32.mxu0 0.0
  %126 = vmatmul.mubr.f32.gmra.mrb[0].mxu0 %v50
  %v127 = vpop.f32.mrb[0].mxu0
  %v128 = vadd.f32 0.0, %v127
  %v129 = vpop.f32.mrb[0].mxu0
  %130 = vdwg.mxu0
  %v131 = vld [vmem:[%s2] sm:$0xff]
  %v132 = vld [vmem:[%s2 + $0x8] sm:$0xff]
  %v133 = vld [vmem:[%s4] sm:$0x1]
  %v135 = vlaneseq
  %v136 = vshrl.u32 %v135, 7
  %v137 = vsub.s32 0, %v136
  %v138 = vrot.slane %v133, %v137
  %vm140 = vcmask 130048
  %v142 = vsel %vm140, %v123, 0
  %v145 = vsel %vm140, %v128, 0
  %147 = vmatprep.subr.mxu0 0.0
  %148 = vmatpush1.msra.mxu0 %v131
  %149 = vmatprep.subr.mxu0 0.0
  %150 = vmatpush1.msra.mxu0 %v132
  %151 = vmatprep.subr.mxu0 0.0
  %152 = vmatpush1.msra.mxu0 0.0
  %153 = vmatprep.subr.mxu0 0.0
  %154 = vmatpush1.msra.mxu0 0.0
  %155 = vmatprep.subr.mxu0 0.0
  %156 = vmatpush1.msra.mxu0 0.0
  %157 = vmatprep.subr.mxu0 0.0
  %158 = vmatpush1.msra.mxu0 0.0
  %159 = vmatprep.subr.mxu0 0.0
  %160 = vmatpush1.msra.mxu0 0.0
  %161 = vmatprep.subr.mxu0 0.0
  %162 = vmatpush1.msra.mxu0 0.0
  %163 = vmatprep.subr.mxu0 0.0
  %164 = vmatpush1.msra.mxu0 0.0
  %165 = vmatprep.subr.mxu0 0.0
  %166 = vmatpush1.msra.mxu0 0.0
  %167 = vmatprep.subr.mxu0 0.0
  %168 = vmatpush1.msra.mxu0 0.0
  %169 = vmatprep.subr.mxu0 0.0
  %170 = vmatpush1.msra.mxu0 0.0
  %171 = vmatprep.subr.mxu0 0.0
  %172 = vmatpush1.msra.mxu0 0.0
  %173 = vmatprep.subr.mxu0 0.0
  %174 = vmatpush1.msra.mxu0 0.0
  %175 = vmatprep.subr.mxu0 0.0
  %176 = vmatpush1.msra.mxu0 0.0
  %177 = vmatprep.subr.mxu0 0.0
  %178 = vmatpush1.msra.mxu0 0.0
  %179 = vmatprep.subr.mxu0 0.0
  %180 = vmatpush1.msra.mxu0 0.0
  %181 = vmatprep.subr.mxu0 0.0
  %182 = vmatpush1.msra.mxu0 0.0
  %183 = vmatprep.subr.mxu0 0.0
  %184 = vmatpush1.msra.mxu0 0.0
  %185 = vmatprep.subr.mxu0 0.0
  %186 = vmatpush1.msra.mxu0 0.0
  %187 = vmatprep.subr.mxu0 0.0
  %188 = vmatpush1.msra.mxu0 0.0
  %189 = vmatprep.subr.mxu0 0.0
  %190 = vmatpush1.msra.mxu0 0.0
  %191 = vmatprep.subr.mxu0 0.0
  %192 = vmatpush1.msra.mxu0 0.0
  %193 = vmatprep.subr.mxu0 0.0
  %194 = vmatpush1.msra.mxu0 0.0
  %195 = vmatprep.subr.mxu0 0.0
  %196 = vmatpush1.msra.mxu0 0.0
  %197 = vmatprep.subr.mxu0 0.0
  %198 = vmatpush1.msra.mxu0 0.0
  %199 = vmatprep.subr.mxu0 0.0
  %200 = vmatpush1.msra.mxu0 0.0
  %201 = vmatprep.subr.mxu0 0.0
  %202 = vmatpush1.msra.mxu0 0.0
  %203 = vmatprep.subr.mxu0 0.0
  %204 = vmatpush1.msra.mxu0 0.0
  %205 = vmatprep.subr.mxu0 0.0
  %206 = vmatpush1.msra.mxu0 0.0
  %207 = vmatprep.subr.mxu0 0.0
  %208 = vmatpush1.msra.mxu0 0.0
  %209 = vmatprep.subr.mxu0 0.0
  %210 = vmatpush1.msra.mxu0 0.0
  %211 = vmatprep.mubr.f32.mxu0 0.0
  %212 = vmatmul.mubr.f32.gmra.mrb[0].mxu0 %v142
  %v213 = vpop.f32.mrb[0].mxu0
  %v214 = vadd.f32 %v138, %v213
  %v215 = vpop.f32.mrb[0].mxu0
  %216 = vmatprep.mubr.f32.mxu0 0.0
  %217 = vmatmul.mubr.f32.gmra.mrb[0].mxu0 %v145
  %v218 = vpop.f32.mrb[0].mxu0
  %v219 = vadd.f32 %v138, %v218
  %v220 = vpop.f32.mrb[0].mxu0
  %221 = vdwg.mxu0
  %v222 = vld [vmem:[%s3] sm:$0xff]
  %v223 = vld [vmem:[%s3 + $0x8] sm:$0xff]
  %v224 = vld [vmem:[%s3 + $0x10] sm:$0xff]
  %v225 = vld [vmem:[%s3 + $0x18] sm:$0xff]
  %vm226 = vcmask 261120
  %v228 = vsel %vm226, 0.0, 0
  %230 = vmatprep.subr.mxu0 0.0
  %231 = vmatpush1.msra.mxu0 %v222
  %232 = vmatprep.subr.mxu0 0.0
  %233 = vmatpush1.msra.mxu0 %v223
  %234 = vmatprep.subr.mxu0 0.0
  %235 = vmatpush1.msra.mxu0 %v224
  %236 = vmatprep.subr.mxu0 0.0
  %237 = vmatpush1.msra.mxu0 %v225
  %238 = vmatprep.subr.mxu0 0.0
  %239 = vmatpush1.msra.mxu0 0.0
  %240 = vmatprep.subr.mxu0 0.0
  %241 = vmatpush1.msra.mxu0 0.0
  %242 = vmatprep.subr.mxu0 0.0
  %243 = vmatpush1.msra.mxu0 0.0
  %244 = vmatprep.subr.mxu0 0.0
  %245 = vmatpush1.msra.mxu0 0.0
  %246 = vmatprep.subr.mxu0 0.0
  %247 = vmatpush1.msra.mxu0 0.0
  %248 = vmatprep.subr.mxu0 0.0
  %249 = vmatpush1.msra.mxu0 0.0
  %250 = vmatprep.subr.mxu0 0.0
  %251 = vmatpush1.msra.mxu0 0.0
  %252 = vmatprep.subr.mxu0 0.0
  %253 = vmatpush1.msra.mxu0 0.0
  %254 = vmatprep.subr.mxu0 0.0
  %255 = vmatpush1.msra.mxu0 0.0
  %256 = vmatprep.subr.mxu0 0.0
  %257 = vmatpush1.msra.mxu0 0.0
  %258 = vmatprep.subr.mxu0 0.0
  %259 = vmatpush1.msra.mxu0 0.0
  %260 = vmatprep.subr.mxu0 0.0
  %261 = vmatpush1.msra.mxu0 0.0
  %262 = vmatprep.subr.mxu0 0.0
  %263 = vmatpush1.msra.mxu0 0.0
  %264 = vmatprep.subr.mxu0 0.0
  %265 = vmatpush1.msra.mxu0 0.0
  %266 = vmatprep.subr.mxu0 0.0
  %267 = vmatpush1.msra.mxu0 0.0
  %268 = vmatprep.subr.mxu0 0.0
  %269 = vmatpush1.msra.mxu0 0.0
  %270 = vmatprep.subr.mxu0 0.0
  %271 = vmatpush1.msra.mxu0 0.0
  %272 = vmatprep.subr.mxu0 0.0
  %273 = vmatpush1.msra.mxu0 0.0
  %274 = vmatprep.subr.mxu0 0.0
  %275 = vmatpush1.msra.mxu0 0.0
  %276 = vmatprep.subr.mxu0 0.0
  %277 = vmatpush1.msra.mxu0 0.0
  %278 = vmatprep.subr.mxu0 0.0
  %279 = vmatpush1.msra.mxu0 0.0
  %280 = vmatprep.subr.mxu0 0.0
  %281 = vmatpush1.msra.mxu0 0.0
  %282 = vmatprep.subr.mxu0 0.0
  %283 = vmatpush1.msra.mxu0 0.0
  %284 = vmatprep.subr.mxu0 0.0
  %285 = vmatpush1.msra.mxu0 0.0
  %286 = vmatprep.subr.mxu0 0.0
  %287 = vmatpush1.msra.mxu0 0.0
  %288 = vmatprep.subr.mxu0 0.0
  %289 = vmatpush1.msra.mxu0 0.0
  %290 = vmatprep.subr.mxu0 0.0
  %291 = vmatpush1.msra.mxu0 0.0
  %292 = vmatprep.subr.mxu0 0.0
  %293 = vmatpush1.msra.mxu0 0.0
  %294 = vmatprep.mubr.f32.mxu0 0.0
  %295 = vmatmul.mubr.f32.gmra.mrb[0].mxu0 %v228
  %v296 = vpop.f32.mrb[0].mxu0
  %v297 = vadd.f32 0.0, %v296
  %v298 = vpop.f32.mrb[0].mxu0
  %299 = vdwg.mxu0
  %v301 = vrot.slane %v297, 1
  %v304 = vadd.f32 %v214, %v297
  %v305 = vadd.f32 %v219, %v301
  %v306 = vtanh.pop %v304
  %v307 = vtanh.pop %v305
  %vm308 = vcmask 253952
  %309 = vst.msk [vmem:[#allocation2] sm:$0x1] %vm308, %v306
  %310 = vst.msk [vmem:[#allocation2 + $0x8] sm:$0x1] %vm308, %v307
  %v313 = vrot.slane %v307, 7
  %vm314 = vcmask 1041409
  %v315 = vsel %vm314, %v313, %v306
  %v316 = vsel %vm226, %v315, 0
  %318 = vmatprep.subr.mxu0 0.0
  %319 = vmatpush1.msra.mxu0 %v222
  %320 = vmatprep.subr.mxu0 0.0
  %321 = vmatpush1.msra.mxu0 %v223
  %322 = vmatprep.subr.mxu0 0.0
  %323 = vmatpush1.msra.mxu0 %v224
  %324 = vmatprep.subr.mxu0 0.0
  %325 = vmatpush1.msra.mxu0 %v225
  %326 = vmatprep.subr.mxu0 0.0
  %327 = vmatpush1.msra.mxu0 0.0
  %328 = vmatprep.subr.mxu0 0.0
  %329 = vmatpush1.msra.mxu0 0.0
  %330 = vmatprep.subr.mxu0 0.0
  %331 = vmatpush1.msra.mxu0 0.0
  %332 = vmatprep.subr.mxu0 0.0
  %333 = vmatpush1.msra.mxu0 0.0
  %334 = vmatprep.subr.mxu0 0.0
  %335 = vmatpush1.msra.mxu0 0.0
  %336 = vmatprep.subr.mxu0 0.0
  %337 = vmatpush1.msra.mxu0 0.0
  %338 = vmatprep.subr.mxu0 0.0
  %339 = vmatpush1.msra.mxu0 0.0
  %340 = vmatprep.subr.mxu0 0.0
  %341 = vmatpush1.msra.mxu0 0.0
  %342 = vmatprep.subr.mxu0 0.0
  %343 = vmatpush1.msra.mxu0 0.0
  %344 = vmatprep.subr.mxu0 0.0
  %345 = vmatpush1.msra.mxu0 0.0
  %346 = vmatprep.subr.mxu0 0.0
  %347 = vmatpush1.msra.mxu0 0.0
  %348 = vmatprep.subr.mxu0 0.0
  %349 = vmatpush1.msra.mxu0 0.0
  %350 = vmatprep.subr.mxu0 0.0
  %351 = vmatpush1.msra.mxu0 0.0
  %352 = vmatprep.subr.mxu0 0.0
  %353 = vmatpush1.msra.mxu0 0.0
  %354 = vmatprep.subr.mxu0 0.0
  %355 = vmatpush1.msra.mxu0 0.0
  %356 = vmatprep.subr.mxu0 0.0
  %357 = vmatpush1.msra.mxu0 0.0
  %358 = vmatprep.subr.mxu0 0.0
  %359 = vmatpush1.msra.mxu0 0.0
  %360 = vmatprep.subr.mxu0 0.0
  %361 = vmatpush1.msra.mxu0 0.0
  %362 = vmatprep.subr.mxu0 0.0
  %363 = vmatpush1.msra.mxu0 0.0
  %364 = vmatprep.subr.mxu0 0.0
  %365 = vmatpush1.msra.mxu0 0.0
  %366 = vmatprep.subr.mxu0 0.0
  %367 = vmatpush1.msra.mxu0 0.0
  %368 = vmatprep.subr.mxu0 0.0
  %369 = vmatpush1.msra.mxu0 0.0
  %370 = vmatprep.subr.mxu0 0.0
  %371 = vmatpush1.msra.mxu0 0.0
  %372 = vmatprep.subr.mxu0 0.0
  %373 = vmatpush1.msra.mxu0 0.0
  %374 = vmatprep.subr.mxu0 0.0
  %375 = vmatpush1.msra.mxu0 0.0
  %376 = vmatprep.subr.mxu0 0.0
  %377 = vmatpush1.msra.mxu0 0.0
  %378 = vmatprep.subr.mxu0 0.0
  %379 = vmatpush1.msra.mxu0 0.0
  %380 = vmatprep.subr.mxu0 0.0
  %381 = vmatpush1.msra.mxu0 0.0
  %382 = vmatprep.mubr.f32.mxu0 0.0
  %383 = vmatmul.mubr.f32.gmra.mrb[0].mxu0 %v316
  %v384 = vpop.f32.mrb[0].mxu0
  %v385 = vadd.f32 0.0, %v384
  %v386 = vpop.f32.mrb[0].mxu0
  %387 = vdwg.mxu0
  %v389 = vrot.slane %v385, 7
  %v392 = vadd.f32 %v214, %v389
  %v393 = vadd.f32 %v219, %v385
  %v394 = vtanh.pop %v392
  %v395 = vtanh.pop %v393
  %vm396 = vcmask 254977
  %397 = vst.msk [vmem:[#allocation2] sm:$0x2] %vm396, %v394
  %398 = vst.msk [vmem:[#allocation2 + $0x8] sm:$0x2] %vm396, %v395
  %v401 = vrot.slane %v394, 1
  %v402 = vsel %vm314, %v395, %v401
  %v403 = vsel %vm226, %v402, 0
  %405 = vmatprep.subr.mxu0 0.0
  %406 = vmatpush1.msra.mxu0 %v222
  %407 = vmatprep.subr.mxu0 0.0
  %408 = vmatpush1.msra.mxu0 %v223
  %409 = vmatprep.subr.mxu0 0.0
  %410 = vmatpush1.msra.mxu0 %v224
  %411 = vmatprep.subr.mxu0 0.0
  %412 = vmatpush1.msra.mxu0 %v225
  %413 = vmatprep.subr.mxu0 0.0
  %414 = vmatpush1.msra.mxu0 0.0
  %415 = vmatprep.subr.mxu0 0.0
  %416 = vmatpush1.msra.mxu0 0.0
  %417 = vmatprep.subr.mxu0 0.0
  %418 = vmatpush1.msra.mxu0 0.0
  %419 = vmatprep.subr.mxu0 0.0
  %420 = vmatpush1.msra.mxu0 0.0
  %421 = vmatprep.subr.mxu0 0.0
  %422 = vmatpush1.msra.mxu0 0.0
  %423 = vmatprep.subr.mxu0 0.0
  %424 = vmatpush1.msra.mxu0 0.0
  %425 = vmatprep.subr.mxu0 0.0
  %426 = vmatpush1.msra.mxu0 0.0
  %427 = vmatprep.subr.mxu0 0.0
  %428 = vmatpush1.msra.mxu0 0.0
  %429 = vmatprep.subr.mxu0 0.0
  %430 = vmatpush1.msra.mxu0 0.0
  %431 = vmatprep.subr.mxu0 0.0
  %432 = vmatpush1.msra.mxu0 0.0
  %433 = vmatprep.subr.mxu0 0.0
  %434 = vmatpush1.msra.mxu0 0.0
  %435 = vmatprep.subr.mxu0 0.0
  %436 = vmatpush1.msra.mxu0 0.0
  %437 = vmatprep.subr.mxu0 0.0
  %438 = vmatpush1.msra.mxu0 0.0
  %439 = vmatprep.subr.mxu0 0.0
  %440 = vmatpush1.msra.mxu0 0.0
  %441 = vmatprep.subr.mxu0 0.0
  %442 = vmatpush1.msra.mxu0 0.0
  %443 = vmatprep.subr.mxu0 0.0
  %444 = vmatpush1.msra.mxu0 0.0
  %445 = vmatprep.subr.mxu0 0.0
  %446 = vmatpush1.msra.mxu0 0.0
  %447 = vmatprep.subr.mxu0 0.0
  %448 = vmatpush1.msra.mxu0 0.0
  %449 = vmatprep.subr.mxu0 0.0
  %450 = vmatpush1.msra.mxu0 0.0
  %451 = vmatprep.subr.mxu0 0.0
  %452 = vmatpush1.msra.mxu0 0.0
  %453 = vmatprep.subr.mxu0 0.0
  %454 = vmatpush1.msra.mxu0 0.0
  %455 = vmatprep.subr.mxu0 0.0
  %456 = vmatpush1.msra.mxu0 0.0
  %457 = vmatprep.subr.mxu0 0.0
  %458 = vmatpush1.msra.mxu0 0.0
  %459 = vmatprep.subr.mxu0 0.0
  %460 = vmatpush1.msra.mxu0 0.0
  %461 = vmatprep.subr.mxu0 0.0
  %462 = vmatpush1.msra.mxu0 0.0
  %463 = vmatprep.subr.mxu0 0.0
  %464 = vmatpush1.msra.mxu0 0.0
  %465 = vmatprep.subr.mxu0 0.0
  %466 = vmatpush1.msra.mxu0 0.0
  %467 = vmatprep.subr.mxu0 0.0
  %468 = vmatpush1.msra.mxu0 0.0
  %469 = vmatprep.mubr.f32.mxu0 0.0
  %470 = vmatmul.mubr.f32.gmra.mrb[0].mxu0 %v403
  %v471 = vpop.f32.mrb[0].mxu0
  %v472 = vadd.f32 0.0, %v471
  %v473 = vpop.f32.mrb[0].mxu0
  %474 = vdwg.mxu0
  %v476 = vrot.slane %v472, 6
  %v477 = vrot.slane %v472, 7
  %v480 = vadd.f32 %v214, %v476
  %v481 = vadd.f32 %v219, %v477
  %v482 = vtanh.pop %v480
  %v483 = vtanh.pop %v481
  %vm484 = vcmask 256002
  %485 = vst.msk [vmem:[#allocation2] sm:$0x4] %vm484, %v482
  %486 = vst.msk [vmem:[#allocation2 + $0x8] sm:$0x4] %vm484, %v483
  %v489 = vrot.slane %v482, 2
  %v490 = vrot.slane %v483, 1
  %v491 = vsel %vm314, %v490, %v489
  %v492 = vsel %vm226, %v491, 0
  %494 = vmatprep.subr.mxu0 0.0
  %495 = vmatpush1.msra.mxu0 %v222
  %496 = vmatprep.subr.mxu0 0.0
  %497 = vmatpush1.msra.mxu0 %v223
  %498 = vmatprep.subr.mxu0 0.0
  %499 = vmatpush1.msra.mxu0 %v224
  %500 = vmatprep.subr.mxu0 0.0
  %501 = vmatpush1.msra.mxu0 %v225
  %502 = vmatprep.subr.mxu0 0.0
  %503 = vmatpush1.msra.mxu0 0.0
  %504 = vmatprep.subr.mxu0 0.0
  %505 = vmatpush1.msra.mxu0 0.0
  %506 = vmatprep.subr.mxu0 0.0
  %507 = vmatpush1.msra.mxu0 0.0
  %508 = vmatprep.subr.mxu0 0.0
  %509 = vmatpush1.msra.mxu0 0.0
  %510 = vmatprep.subr.mxu0 0.0
  %511 = vmatpush1.msra.mxu0 0.0
  %512 = vmatprep.subr.mxu0 0.0
  %513 = vmatpush1.msra.mxu0 0.0
  %514 = vmatprep.subr.mxu0 0.0
  %515 = vmatpush1.msra.mxu0 0.0
  %516 = vmatprep.subr.mxu0 0.0
  %517 = vmatpush1.msra.mxu0 0.0
  %518 = vmatprep.subr.mxu0 0.0
  %519 = vmatpush1.msra.mxu0 0.0
  %520 = vmatprep.subr.mxu0 0.0
  %521 = vmatpush1.msra.mxu0 0.0
  %522 = vmatprep.subr.mxu0 0.0
  %523 = vmatpush1.msra.mxu0 0.0
  %524 = vmatprep.subr.mxu0 0.0
  %525 = vmatpush1.msra.mxu0 0.0
  %526 = vmatprep.subr.mxu0 0.0
  %527 = vmatpush1.msra.mxu0 0.0
  %528 = vmatprep.subr.mxu0 0.0
  %529 = vmatpush1.msra.mxu0 0.0
  %530 = vmatprep.subr.mxu0 0.0
  %531 = vmatpush1.msra.mxu0 0.0
  %532 = vmatprep.subr.mxu0 0.0
  %533 = vmatpush1.msra.mxu0 0.0
  %534 = vmatprep.subr.mxu0 0.0
  %535 = vmatpush1.msra.mxu0 0.0
  %536 = vmatprep.subr.mxu0 0.0
  %537 = vmatpush1.msra.mxu0 0.0
  %538 = vmatprep.subr.mxu0 0.0
  %539 = vmatpush1.msra.mxu0 0.0
  %540 = vmatprep.subr.mxu0 0.0
  %541 = vmatpush1.msra.mxu0 0.0
  %542 = vmatprep.subr.mxu0 0.0
  %543 = vmatpush1.msra.mxu0 0.0
  %544 = vmatprep.subr.mxu0 0.0
  %545 = vmatpush1.msra.mxu0 0.0
  %546 = vmatprep.subr.mxu0 0.0
  %547 = vmatpush1.msra.mxu0 0.0
  %548 = vmatprep.subr.mxu0 0.0
  %549 = vmatpush1.msra.mxu0 0.0
  %550 = vmatprep.subr.mxu0 0.0
  %551 = vmatpush1.msra.mxu0 0.0
  %552 = vmatprep.subr.mxu0 0.0
  %553 = vmatpush1.msra.mxu0 0.0
  %554 = vmatprep.subr.mxu0 0.0
  %555 = vmatpush1.msra.mxu0 0.0
  %556 = vmatprep.subr.mxu0 0.0
  %557 = vmatpush1.msra.mxu0 0.0
  %558 = vmatprep.mubr.f32.mxu0 0.0
  %559 = vmatmul.mubr.f32.gmra.mrb[0].mxu0 %v492
  %v560 = vpop.f32.mrb[0].mxu0
  %v561 = vadd.f32 0.0, %v560
  %v562 = vpop.f32.mrb[0].mxu0
  %563 = vdwg.mxu0
  %v565 = vrot.slane %v561, 5
  %v566 = vrot.slane %v561, 6
  %v569 = vadd.f32 %v214, %v565
  %v570 = vadd.f32 %v219, %v566
  %v571 = vtanh.pop %v569
  %v572 = vtanh.pop %v570
  %vm573 = vcmask 257027
  %574 = vst.msk [vmem:[#allocation2] sm:$0x8] %vm573, %v571
  %575 = vst.msk [vmem:[#allocation2 + $0x8] sm:$0x8] %vm573, %v572
  %v578 = vrot.slane %v571, 3
  %v579 = vrot.slane %v572, 2
  %v580 = vsel %vm314, %v579, %v578
  %v581 = vsel %vm226, %v580, 0
  %583 = vmatprep.subr.mxu0 0.0
  %584 = vmatpush1.msra.mxu0 %v222
  %585 = vmatprep.subr.mxu0 0.0
  %586 = vmatpush1.msra.mxu0 %v223
  %587 = vmatprep.subr.mxu0 0.0
  %588 = vmatpush1.msra.mxu0 %v224
  %589 = vmatprep.subr.mxu0 0.0
  %590 = vmatpush1.msra.mxu0 %v225
  %591 = vmatprep.subr.mxu0 0.0
  %592 = vmatpush1.msra.mxu0 0.0
  %593 = vmatprep.subr.mxu0 0.0
  %594 = vmatpush1.msra.mxu0 0.0
  %595 = vmatprep.subr.mxu0 0.0
  %596 = vmatpush1.msra.mxu0 0.0
  %597 = vmatprep.subr.mxu0 0.0
  %598 = vmatpush1.msra.mxu0 0.0
  %599 = vmatprep.subr.mxu0 0.0
  %600 = vmatpush1.msra.mxu0 0.0
  %601 = vmatprep.subr.mxu0 0.0
  %602 = vmatpush1.msra.mxu0 0.0
  %603 = vmatprep.subr.mxu0 0.0
  %604 = vmatpush1.msra.mxu0 0.0
  %605 = vmatprep.subr.mxu0 0.0
  %606 = vmatpush1.msra.mxu0 0.0
  %607 = vmatprep.subr.mxu0 0.0
  %608 = vmatpush1.msra.mxu0 0.0
  %609 = vmatprep.subr.mxu0 0.0
  %610 = vmatpush1.msra.mxu0 0.0
  %611 = vmatprep.subr.mxu0 0.0
  %612 = vmatpush1.msra.mxu0 0.0
  %613 = vmatprep.subr.mxu0 0.0
  %614 = vmatpush1.msra.mxu0 0.0
  %615 = vmatprep.subr.mxu0 0.0
  %616 = vmatpush1.msra.mxu0 0.0
  %617 = vmatprep.subr.mxu0 0.0
  %618 = vmatpush1.msra.mxu0 0.0
  %619 = vmatprep.subr.mxu0 0.0
  %620 = vmatpush1.msra.mxu0 0.0
  %621 = vmatprep.subr.mxu0 0.0
  %622 = vmatpush1.msra.mxu0 0.0
  %623 = vmatprep.subr.mxu0 0.0
  %624 = vmatpush1.msra.mxu0 0.0
  %625 = vmatprep.subr.mxu0 0.0
  %626 = vmatpush1.msra.mxu0 0.0
  %627 = vmatprep.subr.mxu0 0.0
  %628 = vmatpush1.msra.mxu0 0.0
  %629 = vmatprep.subr.mxu0 0.0
  %630 = vmatpush1.msra.mxu0 0.0
  %631 = vmatprep.subr.mxu0 0.0
  %632 = vmatpush1.msra.mxu0 0.0
  %633 = vmatprep.subr.mxu0 0.0
  %634 = vmatpush1.msra.mxu0 0.0
  %635 = vmatprep.subr.mxu0 0.0
  %636 = vmatpush1.msra.mxu0 0.0
  %637 = vmatprep.subr.mxu0 0.0
  %638 = vmatpush1.msra.mxu0 0.0
  %639 = vmatprep.subr.mxu0 0.0
  %640 = vmatpush1.msra.mxu0 0.0
  %641 = vmatprep.subr.mxu0 0.0
  %642 = vmatpush1.msra.mxu0 0.0
  %643 = vmatprep.subr.mxu0 0.0
  %644 = vmatpush1.msra.mxu0 0.0
  %645 = vmatprep.subr.mxu0 0.0
  %646 = vmatpush1.msra.mxu0 0.0
  %647 = vmatprep.mubr.f32.mxu0 0.0
  %648 = vmatmul.mubr.f32.gmra.mrb[0].mxu0 %v581
  %v649 = vpop.f32.mrb[0].mxu0
  %v650 = vadd.f32 0.0, %v649
  %v651 = vpop.f32.mrb[0].mxu0
  %652 = vdwg.mxu0
  %v654 = vrot.slane %v650, 4
  %v655 = vrot.slane %v650, 5
  %v658 = vadd.f32 %v214, %v654
  %v659 = vadd.f32 %v219, %v655
  %v660 = vtanh.pop %v658
  %v661 = vtanh.pop %v659
  %vm662 = vcmask 258052
  %663 = vst.msk [vmem:[#allocation2] sm:$0x10] %vm662, %v660
  %664 = vst.msk [vmem:[#allocation2 + $0x8] sm:$0x10] %vm662, %v661
  %v667 = vrot.slane %v660, 4
  %v668 = vrot.slane %v661, 3
  %v669 = vsel %vm314, %v668, %v667
  %v670 = vsel %vm226, %v669, 0
  %672 = vmatprep.subr.mxu0 0.0
  %673 = vmatpush1.msra.mxu0 %v222
  %674 = vmatprep.subr.mxu0 0.0
  %675 = vmatpush1.msra.mxu0 %v223
  %676 = vmatprep.subr.mxu0 0.0
  %677 = vmatpush1.msra.mxu0 %v224
  %678 = vmatprep.subr.mxu0 0.0
  %679 = vmatpush1.msra.mxu0 %v225
  %680 = vmatprep.subr.mxu0 0.0
  %681 = vmatpush1.msra.mxu0 0.0
  %682 = vmatprep.subr.mxu0 0.0
  %683 = vmatpush1.msra.mxu0 0.0
  %684 = vmatprep.subr.mxu0 0.0
  %685 = vmatpush1.msra.mxu0 0.0
  %686 = vmatprep.subr.mxu0 0.0
  %687 = vmatpush1.msra.mxu0 0.0
  %688 = vmatprep.subr.mxu0 0.0
  %689 = vmatpush1.msra.mxu0 0.0
  %690 = vmatprep.subr.mxu0 0.0
  %691 = vmatpush1.msra.mxu0 0.0
  %692 = vmatprep.subr.mxu0 0.0
  %693 = vmatpush1.msra.mxu0 0.0
  %694 = vmatprep.subr.mxu0 0.0
  %695 = vmatpush1.msra.mxu0 0.0
  %696 = vmatprep.subr.mxu0 0.0
  %697 = vmatpush1.msra.mxu0 0.0
  %698 = vmatprep.subr.mxu0 0.0
  %699 = vmatpush1.msra.mxu0 0.0
  %700 = vmatprep.subr.mxu0 0.0
  %701 = vmatpush1.msra.mxu0 0.0
  %702 = vmatprep.subr.mxu0 0.0
  %703 = vmatpush1.msra.mxu0 0.0
  %704 = vmatprep.subr.mxu0 0.0
  %705 = vmatpush1.msra.mxu0 0.0
  %706 = vmatprep.subr.mxu0 0.0
  %707 = vmatpush1.msra.mxu0 0.0
  %708 = vmatprep.subr.mxu0 0.0
  %709 = vmatpush1.msra.mxu0 0.0
  %710 = vmatprep.subr.mxu0 0.0
  %711 = vmatpush1.msra.mxu0 0.0
  %712 = vmatprep.subr.mxu0 0.0
  %713 = vmatpush1.msra.mxu0 0.0
  %714 = vmatprep.subr.mxu0 0.0
  %715 = vmatpush1.msra.mxu0 0.0
  %716 = vmatprep.subr.mxu0 0.0
  %717 = vmatpush1.msra.mxu0 0.0
  %718 = vmatprep.subr.mxu0 0.0
  %719 = vmatpush1.msra.mxu0 0.0
  %720 = vmatprep.subr.mxu0 0.0
  %721 = vmatpush1.msra.mxu0 0.0
  %722 = vmatprep.subr.mxu0 0.0
  %723 = vmatpush1.msra.mxu0 0.0
  %724 = vmatprep.subr.mxu0 0.0
  %725 = vmatpush1.msra.mxu0 0.0
  %726 = vmatprep.subr.mxu0 0.0
  %727 = vmatpush1.msra.mxu0 0.0
  %728 = vmatprep.subr.mxu0 0.0
  %729 = vmatpush1.msra.mxu0 0.0
  %730 = vmatprep.subr.mxu0 0.0
  %731 = vmatpush1.msra.mxu0 0.0
  %732 = vmatprep.subr.mxu0 0.0
  %733 = vmatpush1.msra.mxu0 0.0
  %734 = vmatprep.subr.mxu0 0.0
  %735 = vmatpush1.msra.mxu0 0.0
  %736 = vmatprep.mubr.f32.mxu0 0.0
  %737 = vmatmul.mubr.f32.gmra.mrb[0].mxu0 %v670
  %v738 = vpop.f32.mrb[0].mxu0
  %v739 = vadd.f32 0.0, %v738
  %v740 = vpop.f32.mrb[0].mxu0
  %741 = vdwg.mxu0
  %v743 = vrot.slane %v739, 3
  %v744 = vrot.slane %v739, 4
  %v747 = vadd.f32 %v214, %v743
  %v748 = vadd.f32 %v219, %v744
  %v749 = vtanh.pop %v747
  %v750 = vtanh.pop %v748
  %vm751 = vcmask 259077
  %752 = vst.msk [vmem:[#allocation2] sm:$0x20] %vm751, %v749
  %753 = vst.msk [vmem:[#allocation2 + $0x8] sm:$0x20] %vm751, %v750
  %v756 = vrot.slane %v749, 5
  %v757 = vrot.slane %v750, 4
  %v758 = vsel %vm314, %v757, %v756
  %v759 = vsel %vm226, %v758, 0
  %761 = vmatprep.subr.mxu0 0.0
  %762 = vmatpush1.msra.mxu0 %v222
  %763 = vmatprep.subr.mxu0 0.0
  %764 = vmatpush1.msra.mxu0 %v223
  %765 = vmatprep.subr.mxu0 0.0
  %766 = vmatpush1.msra.mxu0 %v224
  %767 = vmatprep.subr.mxu0 0.0
  %768 = vmatpush1.msra.mxu0 %v225
  %769 = vmatprep.subr.mxu0 0.0
  %770 = vmatpush1.msra.mxu0 0.0
  %771 = vmatprep.subr.mxu0 0.0
  %772 = vmatpush1.msra.mxu0 0.0
  %773 = vmatprep.subr.mxu0 0.0
  %774 = vmatpush1.msra.mxu0 0.0
  %775 = vmatprep.subr.mxu0 0.0
  %776 = vmatpush1.msra.mxu0 0.0
  %777 = vmatprep.subr.mxu0 0.0
  %778 = vmatpush1.msra.mxu0 0.0
  %779 = vmatprep.subr.mxu0 0.0
  %780 = vmatpush1.msra.mxu0 0.0
  %781 = vmatprep.subr.mxu0 0.0
  %782 = vmatpush1.msra.mxu0 0.0
  %783 = vmatprep.subr.mxu0 0.0
  %784 = vmatpush1.msra.mxu0 0.0
  %785 = vmatprep.subr.mxu0 0.0
  %786 = vmatpush1.msra.mxu0 0.0
  %787 = vmatprep.subr.mxu0 0.0
  %788 = vmatpush1.msra.mxu0 0.0
  %789 = vmatprep.subr.mxu0 0.0
  %790 = vmatpush1.msra.mxu0 0.0
  %791 = vmatprep.subr.mxu0 0.0
  %792 = vmatpush1.msra.mxu0 0.0
  %793 = vmatprep.subr.mxu0 0.0
  %794 = vmatpush1.msra.mxu0 0.0
  %795 = vmatprep.subr.mxu0 0.0
  %796 = vmatpush1.msra.mxu0 0.0
  %797 = vmatprep.subr.mxu0 0.0
  %798 = vmatpush1.msra.mxu0 0.0
  %799 = vmatprep.subr.mxu0 0.0
  %800 = vmatpush1.msra.mxu0 0.0
  %801 = vmatprep.subr.mxu0 0.0
  %802 = vmatpush1.msra.mxu0 0.0
  %803 = vmatprep.subr.mxu0 0.0
  %804 = vmatpush1.msra.mxu0 0.0
  %805 = vmatprep.subr.mxu0 0.0
  %806 = vmatpush1.msra.mxu0 0.0
  %807 = vmatprep.subr.mxu0 0.0
  %808 = vmatpush1.msra.mxu0 0.0
  %809 = vmatprep.subr.mxu0 0.0
  %810 = vmatpush1.msra.mxu0 0.0
  %811 = vmatprep.subr.mxu0 0.0
  %812 = vmatpush1.msra.mxu0 0.0
  %813 = vmatprep.subr.mxu0 0.0
  %814 = vmatpush1.msra.mxu0 0.0
  %815 = vmatprep.subr.mxu0 0.0
  %816 = vmatpush1.msra.mxu0 0.0
  %817 = vmatprep.subr.mxu0 0.0
  %818 = vmatpush1.msra.mxu0 0.0
  %819 = vmatprep.subr.mxu0 0.0
  %820 = vmatpush1.msra.mxu0 0.0
  %821 = vmatprep.subr.mxu0 0.0
  %822 = vmatpush1.msra.mxu0 0.0
  %823 = vmatprep.subr.mxu0 0.0
  %824 = vmatpush1.msra.mxu0 0.0
  %825 = vmatprep.mubr.f32.mxu0 0.0
  %826 = vmatmul.mubr.f32.gmra.mrb[0].mxu0 %v759
  %v827 = vpop.f32.mrb[0].mxu0
  %v828 = vadd.f32 0.0, %v827
  %v829 = vpop.f32.mrb[0].mxu0
  %830 = vdwg.mxu0
  %v832 = vrot.slane %v828, 2
  %v833 = vrot.slane %v828, 3
  %v836 = vadd.f32 %v214, %v832
  %v837 = vadd.f32 %v219, %v833
  %v838 = vtanh.pop %v836
  %v839 = vtanh.pop %v837
  %vm840 = vcmask 260102
  %841 = vst.msk [vmem:[#allocation2] sm:$0x40] %vm840, %v838
  %842 = vst.msk [vmem:[#allocation2 + $0x8] sm:$0x40] %vm840, %v839
  %v845 = vrot.slane %v838, 6
  %v846 = vrot.slane %v839, 5
  %v847 = vsel %vm314, %v846, %v845
  %v848 = vsel %vm226, %v847, 0
  %850 = vmatprep.subr.mxu0 0.0
  %851 = vmatpush1.msra.mxu0 %v222
  %852 = vmatprep.subr.mxu0 0.0
  %853 = vmatpush1.msra.mxu0 %v223
  %854 = vmatprep.subr.mxu0 0.0
  %855 = vmatpush1.msra.mxu0 %v224
  %856 = vmatprep.subr.mxu0 0.0
  %857 = vmatpush1.msra.mxu0 %v225
  %858 = vmatprep.subr.mxu0 0.0
  %859 = vmatpush1.msra.mxu0 0.0
  %860 = vmatprep.subr.mxu0 0.0
  %861 = vmatpush1.msra.mxu0 0.0
  %862 = vmatprep.subr.mxu0 0.0
  %863 = vmatpush1.msra.mxu0 0.0
  %864 = vmatprep.subr.mxu0 0.0
  %865 = vmatpush1.msra.mxu0 0.0
  %866 = vmatprep.subr.mxu0 0.0
  %867 = vmatpush1.msra.mxu0 0.0
  %868 = vmatprep.subr.mxu0 0.0
  %869 = vmatpush1.msra.mxu0 0.0
  %870 = vmatprep.subr.mxu0 0.0
  %871 = vmatpush1.msra.mxu0 0.0
  %872 = vmatprep.subr.mxu0 0.0
  %873 = vmatpush1.msra.mxu0 0.0
  %874 = vmatprep.subr.mxu0 0.0
  %875 = vmatpush1.msra.mxu0 0.0
  %876 = vmatprep.subr.mxu0 0.0
  %877 = vmatpush1.msra.mxu0 0.0
  %878 = vmatprep.subr.mxu0 0.0
  %879 = vmatpush1.msra.mxu0 0.0
  %880 = vmatprep.subr.mxu0 0.0
  %881 = vmatpush1.msra.mxu0 0.0
  %882 = vmatprep.subr.mxu0 0.0
  %883 = vmatpush1.msra.mxu0 0.0
  %884 = vmatprep.subr.mxu0 0.0
  %885 = vmatpush1.msra.mxu0 0.0
  %886 = vmatprep.subr.mxu0 0.0
  %887 = vmatpush1.msra.mxu0 0.0
  %888 = vmatprep.subr.mxu0 0.0
  %889 = vmatpush1.msra.mxu0 0.0
  %890 = vmatprep.subr.mxu0 0.0
  %891 = vmatpush1.msra.mxu0 0.0
  %892 = vmatprep.subr.mxu0 0.0
  %893 = vmatpush1.msra.mxu0 0.0
  %894 = vmatprep.subr.mxu0 0.0
  %895 = vmatpush1.msra.mxu0 0.0
  %896 = vmatprep.subr.mxu0 0.0
  %897 = vmatpush1.msra.mxu0 0.0
  %898 = vmatprep.subr.mxu0 0.0
  %899 = vmatpush1.msra.mxu0 0.0
  %900 = vmatprep.subr.mxu0 0.0
  %901 = vmatpush1.msra.mxu0 0.0
  %902 = vmatprep.subr.mxu0 0.0
  %903 = vmatpush1.msra.mxu0 0.0
  %904 = vmatprep.subr.mxu0 0.0
  %905 = vmatpush1.msra.mxu0 0.0
  %906 = vmatprep.subr.mxu0 0.0
  %907 = vmatpush1.msra.mxu0 0.0
  %908 = vmatprep.subr.mxu0 0.0
  %909 = vmatpush1.msra.mxu0 0.0
  %910 = vmatprep.subr.mxu0 0.0
  %911 = vmatpush1.msra.mxu0 0.0
  %912 = vmatprep.subr.mxu0 0.0
  %913 = vmatpush1.msra.mxu0 0.0
  %914 = vmatprep.mubr.f32.mxu0 0.0
  %915 = vmatmul.mubr.f32.gmra.mrb[0].mxu0 %v848
  %v916 = vpop.f32.mrb[0].mxu0
  %v917 = vadd.f32 0.0, %v916
  %v918 = vpop.f32.mrb[0].mxu0
  %919 = vdwg.mxu0
  %v921 = vrot.slane %v917, 1
  %v922 = vrot.slane %v917, 2
  %v925 = vadd.f32 %v214, %v921
  %v926 = vadd.f32 %v219, %v922
  %v927 = vtanh.pop %v925
  %v928 = vtanh.pop %v926
  %vm929 = vcmask 261127
  %930 = vst.msk [vmem:[#allocation2] sm:$0x80] %vm929, %v927
  %931 = vst.msk [vmem:[#allocation2 + $0x8] sm:$0x80] %vm929, %v928
  %v932 = vld [vmem:[#allocation2] sm:$0xff]
  %v933 = vld [vmem:[#allocation2 + $0x8] sm:$0xff]
  %v934 = vld [vmem:[%s5] sm:$0xff]
  %v935 = vld [vmem:[%s5 + $0x8] sm:$0xff]
  %v936 = vld [vmem:[%s5 + $0x10] sm:$0xff]
  %v937 = vld [vmem:[%s5 + $0x18] sm:$0xff]
  %v938 = vld [vmem:[%s6] sm:$0x1]
  %v940 = vlaneseq
  %v941 = vshrl.u32 %v940, 7
  %v942 = vsub.s32 0, %v941
  %v943 = vrot.slane %v938, %v942
  %v946 = vsel %vm226, %v932, 0
  %v949 = vsel %vm226, %v933, 0
  %951 = vmatprep.subr.mxu0 0.0
  %952 = vmatpush1.msra.mxu0 %v934
  %953 = vmatprep.subr.mxu0 0.0
  %954 = vmatpush1.msra.mxu0 %v935
  %955 = vmatprep.subr.mxu0 0.0
  %956 = vmatpush1.msra.mxu0 %v936
  %957 = vmatprep.subr.mxu0 0.0
  %958 = vmatpush1.msra.mxu0 %v937
  %959 = vmatprep.subr.mxu0 0.0
  %960 = vmatpush1.msra.mxu0 0.0
  %961 = vmatprep.subr.mxu0 0.0
  %962 = vmatpush1.msra.mxu0 0.0
  %963 = vmatprep.subr.mxu0 0.0
  %964 = vmatpush1.msra.mxu0 0.0
  %965 = vmatprep.subr.mxu0 0.0
  %966 = vmatpush1.msra.mxu0 0.0
  %967 = vmatprep.subr.mxu0 0.0
  %968 = vmatpush1.msra.mxu0 0.0
  %969 = vmatprep.subr.mxu0 0.0
  %970 = vmatpush1.msra.mxu0 0.0
  %971 = vmatprep.subr.mxu0 0.0
  %972 = vmatpush1.msra.mxu0 0.0
  %973 = vmatprep.subr.mxu0 0.0
  %974 = vmatpush1.msra.mxu0 0.0
  %975 = vmatprep.subr.mxu0 0.0
  %976 = vmatpush1.msra.mxu0 0.0
  %977 = vmatprep.subr.mxu0 0.0
  %978 = vmatpush1.msra.mxu0 0.0
  %979 = vmatprep.subr.mxu0 0.0
  %980 = vmatpush1.msra.mxu0 0.0
  %981 = vmatprep.subr.mxu0 0.0
  %982 = vmatpush1.msra.mxu0 0.0
  %983 = vmatprep.subr.mxu0 0.0
  %984 = vmatpush1.msra.mxu0 0.0
  %985 = vmatprep.subr.mxu0 0.0
  %986 = vmatpush1.msra.mxu0 0.0
  %987 = vmatprep.subr.mxu0 0.0
  %988 = vmatpush1.msra.mxu0 0.0
  %989 = vmatprep.subr.mxu0 0.0
  %990 = vmatpush1.msra.mxu0 0.0
  %991 = vmatprep.subr.mxu0 0.0
  %992 = vmatpush1.msra.mxu0 0.0
  %993 = vmatprep.subr.mxu0 0.0
  %994 = vmatpush1.msra.mxu0 0.0
  %995 = vmatprep.subr.mxu0 0.0
  %996 = vmatpush1.msra.mxu0 0.0
  %997 = vmatprep.subr.mxu0 0.0
  %998 = vmatpush1.msra.mxu0 0.0
  %999 = vmatprep.subr.mxu0 0.0
  %1000 = vmatpush1.msra.mxu0 0.0
  %1001 = vmatprep.subr.mxu0 0.0
  %1002 = vmatpush1.msra.mxu0 0.0
  %1003 = vmatprep.subr.mxu0 0.0
  %1004 = vmatpush1.msra.mxu0 0.0
  %1005 = vmatprep.subr.mxu0 0.0
  %1006 = vmatpush1.msra.mxu0 0.0
  %1007 = vmatprep.subr.mxu0 0.0
  %1008 = vmatpush1.msra.mxu0 0.0
  %1009 = vmatprep.subr.mxu0 0.0
  %1010 = vmatpush1.msra.mxu0 0.0
  %1011 = vmatprep.subr.mxu0 0.0
  %1012 = vmatpush1.msra.mxu0 0.0
  %1013 = vmatprep.subr.mxu0 0.0
  %1014 = vmatpush1.msra.mxu0 0.0
  %1015 = vmatprep.mubr.f32.mxu0 0.0
  %1016 = vmatmul.mubr.f32.gmra.mrb[0].mxu0 %v946
  %v1017 = vpop.f32.mrb[0].mxu0
  %v1018 = vadd.f32 %v943, %v1017
  %v1019 = vpop.f32.mrb[0].mxu0
  %1020 = vmatprep.mubr.f32.mxu0 0.0
  %1021 = vmatmul.mubr.f32.gmra.mrb[0].mxu0 %v949
  %v1022 = vpop.f32.mrb[0].mxu0
  %v1023 = vadd.f32 %v943, %v1022
  %v1024 = vpop.f32.mrb[0].mxu0
  %1025 = vdwg.mxu0
  %vm1026 = vcmask 64512
  %1027 = vst.msk [vmem:[%s7] sm:$0xff] %vm1026, %v1018
  %1028 = vst.msk [vmem:[%s7 + $0x8] sm:$0xff] %vm1026, %v1023
  // Predicated region
  $region30: #{tpu_custom_call.1} parent=0 // pred_check
    _
  $region31: #{tpu_custom_call.1} parent=0 // pred_check_branch
    %1030 = sbr.rel (0) target = $region33
  $region32: #{tpu_custom_call.1} parent=0 // pred_region
    _
  $region33: #{tpu_custom_call.1} parent=0 // pred_fallthru
    _
  // Predicated region
  $region34: #{tpu_custom_call.1} parent=0 // pred_check
    _
  $region35: #{tpu_custom_call.1} parent=0 // pred_check_branch
    %1032 = sbr.rel (0) target = $region37
  $region36: #{tpu_custom_call.1} parent=0 // pred_region
    _
  $region37: #{tpu_custom_call.1} parent=0 // pred_fallthru
    _

</llo_original>
